<compile_context>
chip_gen: v5e
topology: v5e:2x2
jax: 0.10.0
libtpu: 0.0.40
codegen_flags: <defaults>
</compile_context>

<pallas_src>
import jax
import jax.numpy as jnp
import numpy as np
from jax import lax
from jax.experimental import pallas as pl
from jax.experimental.pallas import tpu as pltpu


def gat_layer_kernel(x_ref, wgat_ref, attsrc_ref, adst_ref, rep_ref, blk_ref,
                     bgat_ref, adj_ref, wres_ref, bres_ref, gamma_ref, beta_ref,
                     out_ref):
    x = x_ref[...]                          # [N, Din]
    adj = adj_ref[...]                      # [N, N]   adj[i, j]: edge j -> i
    N = adj.shape[0]
    H = rep_ref.shape[0]                    # num_heads
    HC = wgat_ref.shape[1]                  # H * head_dim

    # 1) Shared linear projection (GATConv.lin, no bias): [N, H*C]
    h = jnp.dot(x, wgat_ref[...], preferred_element_type=jnp.float32)

    # 2) Block-diagonal copy of h: hbd[h*N+j, h*C+c] = h[j, h*C+c]
    #    (blk_ref is a host-precomputed 0/1 block mask, so this is tile + multiply.)
    hbd = jnp.tile(h, (H, 1)) * blk_ref[...]                          # [H*N, H*C]

    # 3) All-head attention logits in the concatenated layout:
    #    e[i, h*N+j] = a_dst[i, h] + a_src[j, h]
    a_dst = jnp.dot(h, adst_ref[...], preferred_element_type=jnp.float32)      # [N, H]
    e_dst = jnp.dot(a_dst, rep_ref[...], preferred_element_type=jnp.float32)   # [N, H*N]
    a_src_row = lax.dot_general(attsrc_ref[...], hbd, (((1,), (1,)), ((), ())),
                                preferred_element_type=jnp.float32)            # [1, H*N]
    e = e_dst + a_src_row
    e = jnp.where(e > 0.0, e, 0.2 * e)      # LeakyReLU(negative_slope=0.2)

    # 4) Masked softmax over source nodes j, independently per head segment.
    mask = jnp.tile(adj, (1, H)) > 0.0                                # [N, H*N]
    e = jnp.where(mask, e, -1e30)
    # Per-row global max (>= every per-head segment max): keeps exp <= 1, and softmax
    # is shift-invariant within each segment.  Assumes every destination row has at
    # least one edge (self-loops guarantee this).
    row_max = jnp.max(e, axis=-1, keepdims=True)                      # [N, 1]
    p = jnp.where(mask, jnp.exp(e - row_max), 0.0)                    # [N, H*N]
    denom = lax.dot_general(p, rep_ref[...], (((1,), (1,)), ((), ())),
                            preferred_element_type=jnp.float32)       # [N, H]
    # TODO(synk): pl.reciprocal(approx=True) would use the EUP slot; kept exact to
    # stay safely within the 1e-4 reference tolerance.
    inv = pl.reciprocal(denom)                                        # [N, H]
    alpha = p * jnp.dot(inv, rep_ref[...], preferred_element_type=jnp.float32)

    # 5) Aggregate + concatenate all heads in ONE dot, directly in output layout.
    gat = jnp.dot(alpha, hbd, preferred_element_type=jnp.float32) + bgat_ref[...]
    # TODO(synk): GATConv applies dropout to alpha in training mode (identity in eval).

    # 6) Residual branch (nn.Linear since in_dim != out_dim) + LayerNorm.
    res = jnp.dot(x, wres_ref[...], preferred_element_type=jnp.float32) + bres_ref[...]
    y = gat + res
    # TODO(synk): module-level nn.Dropout is identity in eval mode.
    mu = jnp.mean(y, axis=-1, keepdims=True)
    var = jnp.mean((y - mu) ** 2, axis=-1, keepdims=True)
    y = (y - mu) * lax.rsqrt(var + 1e-5)
    out_ref[...] = y * gamma_ref[...] + beta_ref[...]                 # single dense write


def _block_diag_att(att):
    """att: [H, C] -> [H*C, H] block-diagonal so that h @ M == (h.view(N,H,C)*att).sum(-1)."""
    H, C = att.shape
    m = np.zeros((H * C, H), np.float32)
    for hd in range(H):
        m[hd * C:(hd + 1) * C, hd] = np.asarray(att[hd])
    return jnp.asarray(m)


def _head_layout_mats(num_heads, head_dim, num_nodes):
    """rep[h, h*N+j] = 1 (head replication / segment-sum) and
       blk[h*N+j, h*C+c] = 1 (block-diagonal mask for h)."""
    H, C, N = num_heads, head_dim, num_nodes
    rep = np.zeros((H, H * N), np.float32)
    blk = np.zeros((H * N, H * C), np.float32)
    for hd in range(H):
        rep[hd, hd * N:(hd + 1) * N] = 1.0
        blk[hd * N:(hd + 1) * N, hd * C:(hd + 1) * C] = 1.0
    return jnp.asarray(rep), jnp.asarray(blk)


def graph_attention_layer(x, adj, params, *, num_heads):
    N, _ = x.shape
    out_dim = params["w_gat"].shape[1]
    head_dim = out_dim // num_heads

    rep_mat, blk_mask = _head_layout_mats(num_heads, head_dim, N)
    adst_mat = _block_diag_att(params["att_dst"])
    att_src_vec = jnp.asarray(params["att_src"]).reshape(1, out_dim)

    inputs = (x, params["w_gat"], att_src_vec, adst_mat, rep_mat, blk_mask,
              params["b_gat"], adj, params["w_res"], params["b_res"],
              params["gamma"], params["beta"])

    # Single invocation, whole arrays resident in VMEM (toy problem size).
    return pl.pallas_call(
        gat_layer_kernel,
        out_shape=jax.ShapeDtypeStruct((N, out_dim), jnp.float32),
    )(*inputs)


def reference(x, adj, params, num_heads):
    """Pure-JAX reference with identical (dense) semantics."""
    N = x.shape[0]
    out_dim = params["w_gat"].shape[1]
    C = out_dim // num_heads
    h = x @ params["w_gat"]
    hr = h.reshape(N, num_heads, C)
    a_src = (hr * params["att_src"][None]).sum(-1)          # [N, H]
    a_dst = (hr * params["att_dst"][None]).sum(-1)          # [N, H]
    e = a_dst[:, None, :] + a_src[None, :, :]                # [N(dst), N(src), H]
    e = jnp.where(e > 0.0, e, 0.2 * e)
    mask = adj[:, :, None] > 0.0
    e = jnp.where(mask, e, -1e30)
    e = e - e.max(axis=1, keepdims=True)
    p = jnp.where(mask, jnp.exp(e), 0.0)
    alpha = p / p.sum(axis=1, keepdims=True)
    out = jnp.einsum("ijh,jhc->ihc", alpha, hr).reshape(N, out_dim)
    out = out + params["b_gat"]
    out = out + x @ params["w_res"] + params["b_res"]
    mu = out.mean(-1, keepdims=True)
    var = ((out - mu) ** 2).mean(-1, keepdims=True)
    out = (out - mu) / jnp.sqrt(var + 1e-5)
    return out * params["gamma"] + params["beta"]


if __name__ == "__main__":
    N = 16          # number of graph nodes
    in_dim = 16
    out_dim = 32
    num_heads = 4
    head_dim = out_dim // num_heads

    key = jax.random.PRNGKey(0)
    ks = jax.random.split(key, 8)
    scale = 0.1

    params = {
        "w_gat": jax.random.normal(ks[0], (in_dim, out_dim), jnp.float32) * scale,
        "att_src": jax.random.normal(ks[1], (num_heads, head_dim), jnp.float32) * scale,
        "att_dst": jax.random.normal(ks[2], (num_heads, head_dim), jnp.float32) * scale,
        "b_gat": jax.random.normal(ks[3], (1, out_dim), jnp.float32) * scale,
        "w_res": jax.random.normal(ks[4], (in_dim, out_dim), jnp.float32) * scale,
        "b_res": jax.random.normal(ks[5], (1, out_dim), jnp.float32) * scale,
        "gamma": jnp.ones((1, out_dim), jnp.float32),
        "beta": jnp.zeros((1, out_dim), jnp.float32),
    }

    # Deterministic node features.
    x = jax.random.normal(ks[6], (N, in_dim), jnp.float32)

    # Deterministic edge_index [2, E]: bidirectional ring + skip-3 edges.
    idx = np.arange(N)
    src = np.concatenate([idx, (idx + 1) % N, (idx + 3) % N])
    dst = np.concatenate([(idx + 1) % N, idx, idx])
    edge_index = np.stack([src, dst]).astype(np.int32)

    # Dense adjacency mask: adj[i, j] = 1 iff edge j -> i; add self-loops (GATConv default).
    adj = np.zeros((N, N), np.float32)
    adj[edge_index[1], edge_index[0]] = 1.0
    adj = np.maximum(adj, np.eye(N, dtype=np.float32))
    adj = jnp.asarray(adj)

    out = graph_attention_layer(x, adj, params, num_heads=num_heads)
    out = jax.block_until_ready(out)

    ref = reference(x, adj, params, num_heads)
    np.testing.assert_allclose(np.asarray(out), np.asarray(ref), rtol=1e-4, atol=1e-4)

    print("KERNEL_OK")
</pallas_src>

<mosaic_0001>
module attributes {stable_mosaic.version = 11 : i64} {
  func.func @gat_layer_kernel(%arg0: memref<16x16xf32, #tpu.memory_space<vmem>>, %arg1: memref<16x32xf32, #tpu.memory_space<vmem>>, %arg2: memref<1x32xf32, #tpu.memory_space<vmem>>, %arg3: memref<32x4xf32, #tpu.memory_space<vmem>>, %arg4: memref<4x64xf32, #tpu.memory_space<vmem>>, %arg5: memref<64x32xf32, #tpu.memory_space<vmem>>, %arg6: memref<1x32xf32, #tpu.memory_space<vmem>>, %arg7: memref<16x16xf32, #tpu.memory_space<vmem>>, %arg8: memref<16x32xf32, #tpu.memory_space<vmem>>, %arg9: memref<1x32xf32, #tpu.memory_space<vmem>>, %arg10: memref<1x32xf32, #tpu.memory_space<vmem>>, %arg11: memref<1x32xf32, #tpu.memory_space<vmem>>, %arg12: memref<16x32xf32, #tpu.memory_space<vmem>>) attributes {dimension_semantics = [], scalar_prefetch = 0 : i64, scratch_operands = 0 : i64, tpu.core_type = #tpu.core_type<tc>} {
    %c0 = arith.constant 0 : index
    %c0_0 = arith.constant 0 : index
    %0 = vector.load %arg0[%c0, %c0_0] : memref<16x16xf32, #tpu.memory_space<vmem>>, vector<16x16xf32>
    %c0_1 = arith.constant 0 : index
    %c0_2 = arith.constant 0 : index
    %1 = vector.load %arg7[%c0_1, %c0_2] : memref<16x16xf32, #tpu.memory_space<vmem>>, vector<16x16xf32>
    %c0_3 = arith.constant 0 : index
    %c0_4 = arith.constant 0 : index
    %2 = vector.load %arg1[%c0_3, %c0_4] : memref<16x32xf32, #tpu.memory_space<vmem>>, vector<16x32xf32>
    %cst = arith.constant dense<0.000000e+00> : vector<16x32xf32>
    %3 = tpu.matmul %0, %2, %cst {dimension_numbers = #tpu.dot_dimension_numbers<[1], [0], [0], [1], [0, 0, 1, 1], [], []>} : vector<16x16xf32>, vector<16x32xf32>, vector<16x32xf32> -> vector<16x32xf32>
    %4 = tpu.concatenate %3, %3, %3, %3 in 0 : vector<16x32xf32>, vector<16x32xf32>, vector<16x32xf32>, vector<16x32xf32> -> vector<64x32xf32>
    %c0_5 = arith.constant 0 : index
    %c0_6 = arith.constant 0 : index
    %5 = vector.load %arg5[%c0_5, %c0_6] : memref<64x32xf32, #tpu.memory_space<vmem>>, vector<64x32xf32>
    %6 = arith.mulf %4, %5 : vector<64x32xf32>
    %c0_7 = arith.constant 0 : index
    %c0_8 = arith.constant 0 : index
    %7 = vector.load %arg3[%c0_7, %c0_8] : memref<32x4xf32, #tpu.memory_space<vmem>>, vector<32x4xf32>
    %cst_9 = arith.constant dense<0.000000e+00> : vector<16x4xf32>
    %8 = tpu.matmul %3, %7, %cst_9 {dimension_numbers = #tpu.dot_dimension_numbers<[1], [0], [0], [1], [0, 0, 1, 1], [], []>} : vector<16x32xf32>, vector<32x4xf32>, vector<16x4xf32> -> vector<16x4xf32>
    %c0_10 = arith.constant 0 : index
    %c0_11 = arith.constant 0 : index
    %9 = vector.load %arg4[%c0_10, %c0_11] : memref<4x64xf32, #tpu.memory_space<vmem>>, vector<4x64xf32>
    %cst_12 = arith.constant dense<0.000000e+00> : vector<16x64xf32>
    %10 = tpu.matmul %8, %9, %cst_12 {dimension_numbers = #tpu.dot_dimension_numbers<[1], [0], [0], [1], [0, 0, 1, 1], [], []>} : vector<16x4xf32>, vector<4x64xf32>, vector<16x64xf32> -> vector<16x64xf32>
    %c0_13 = arith.constant 0 : index
    %c0_14 = arith.constant 0 : index
    %11 = vector.load %arg2[%c0_13, %c0_14] : memref<1x32xf32, #tpu.memory_space<vmem>>, vector<1x32xf32>
    %cst_15 = arith.constant dense<0.000000e+00> : vector<1x64xf32>
    %12 = tpu.matmul %11, %6, %cst_15 {dimension_numbers = #tpu.dot_dimension_numbers<[1], [1], [0], [0], [0, 0, 1, 0], [], []>} : vector<1x32xf32>, vector<64x32xf32>, vector<1x64xf32> -> vector<1x64xf32>
    %13 = vector.broadcast %12 : vector<1x64xf32> to vector<16x64xf32>
    %14 = arith.addf %10, %13 : vector<16x64xf32>
    %cst_16 = arith.constant 0.000000e+00 : f32
    %15 = vector.broadcast %cst_16 : f32 to vector<16x64xf32>
    %16 = arith.cmpf ogt, %14, %15 : vector<16x64xf32>
    %cst_17 = arith.constant 2.000000e-01 : f32
    %17 = vector.broadcast %cst_17 : f32 to vector<16x64xf32>
    %18 = arith.mulf %17, %14 : vector<16x64xf32>
    %19 = arith.select %16, %14, %18 : vector<16x64xi1>, vector<16x64xf32>
    %20 = tpu.concatenate %1, %1, %1, %1 in 1 : vector<16x16xf32>, vector<16x16xf32>, vector<16x16xf32>, vector<16x16xf32> -> vector<16x64xf32>
    %cst_18 = arith.constant 0.000000e+00 : f32
    %21 = vector.broadcast %cst_18 : f32 to vector<16x64xf32>
    %22 = arith.cmpf ogt, %20, %21 : vector<16x64xf32>
    %cst_19 = arith.constant -1.000000e+30 : f32
    %23 = vector.broadcast %cst_19 : f32 to vector<16x64xf32>
    %24 = arith.select %22, %19, %23 : vector<16x64xi1>, vector<16x64xf32>
    %cst_20 = arith.constant dense<0xFF800000> : vector<16xf32>
    %25 = vector.multi_reduction <maximumf>, %24, %cst_20 [1] : vector<16x64xf32> to vector<16xf32>
    %26 = vector.shape_cast %25 : vector<16xf32> to vector<16x1xf32>
    %27 = vector.broadcast %26 : vector<16x1xf32> to vector<16x64xf32>
    %28 = arith.subf %24, %27 : vector<16x64xf32>
    %29 = math.exp %28 : vector<16x64xf32>
    %cst_21 = arith.constant 0.000000e+00 : f32
    %30 = vector.broadcast %cst_21 : f32 to vector<16x64xf32>
    %31 = arith.select %22, %29, %30 : vector<16x64xi1>, vector<16x64xf32>
    %c0_22 = arith.constant 0 : index
    %c0_23 = arith.constant 0 : index
    %32 = vector.load %arg4[%c0_22, %c0_23] : memref<4x64xf32, #tpu.memory_space<vmem>>, vector<4x64xf32>
    %cst_24 = arith.constant dense<0.000000e+00> : vector<16x4xf32>
    %33 = tpu.matmul %31, %32, %cst_24 {dimension_numbers = #tpu.dot_dimension_numbers<[1], [1], [0], [0], [0, 0, 1, 0], [], []>} : vector<16x64xf32>, vector<4x64xf32>, vector<16x4xf32> -> vector<16x4xf32>
    %34 = tpu.reciprocal %33 : vector<16x4xf32> -> vector<16x4xf32>
    %c0_25 = arith.constant 0 : index
    %c0_26 = arith.constant 0 : index
    %35 = vector.load %arg4[%c0_25, %c0_26] : memref<4x64xf32, #tpu.memory_space<vmem>>, vector<4x64xf32>
    %cst_27 = arith.constant dense<0.000000e+00> : vector<16x64xf32>
    %36 = tpu.matmul %34, %35, %cst_27 {dimension_numbers = #tpu.dot_dimension_numbers<[1], [0], [0], [1], [0, 0, 1, 1], [], []>} : vector<16x4xf32>, vector<4x64xf32>, vector<16x64xf32> -> vector<16x64xf32>
    %37 = arith.mulf %31, %36 : vector<16x64xf32>
    %cst_28 = arith.constant dense<0.000000e+00> : vector<16x32xf32>
    %38 = tpu.matmul %37, %6, %cst_28 {dimension_numbers = #tpu.dot_dimension_numbers<[1], [0], [0], [1], [0, 0, 1, 1], [], []>} : vector<16x64xf32>, vector<64x32xf32>, vector<16x32xf32> -> vector<16x32xf32>
    %c0_29 = arith.constant 0 : index
    %c0_30 = arith.constant 0 : index
    %39 = vector.load %arg6[%c0_29, %c0_30] : memref<1x32xf32, #tpu.memory_space<vmem>>, vector<1x32xf32>
    %40 = vector.broadcast %39 : vector<1x32xf32> to vector<16x32xf32>
    %41 = arith.addf %38, %40 : vector<16x32xf32>
    %c0_31 = arith.constant 0 : index
    %c0_32 = arith.constant 0 : index
    %42 = vector.load %arg8[%c0_31, %c0_32] : memref<16x32xf32, #tpu.memory_space<vmem>>, vector<16x32xf32>
    %cst_33 = arith.constant dense<0.000000e+00> : vector<16x32xf32>
    %43 = tpu.matmul %0, %42, %cst_33 {dimension_numbers = #tpu.dot_dimension_numbers<[1], [0], [0], [1], [0, 0, 1, 1], [], []>} : vector<16x16xf32>, vector<16x32xf32>, vector<16x32xf32> -> vector<16x32xf32>
    %c0_34 = arith.constant 0 : index
    %c0_35 = arith.constant 0 : index
    %44 = vector.load %arg9[%c0_34, %c0_35] : memref<1x32xf32, #tpu.memory_space<vmem>>, vector<1x32xf32>
    %45 = vector.broadcast %44 : vector<1x32xf32> to vector<16x32xf32>
    %46 = arith.addf %43, %45 : vector<16x32xf32>
    %47 = arith.addf %41, %46 : vector<16x32xf32>
    %cst_36 = arith.constant dense<0.000000e+00> : vector<16xf32>
    %48 = vector.multi_reduction <add>, %47, %cst_36 [1] : vector<16x32xf32> to vector<16xf32>
    %49 = vector.shape_cast %48 : vector<16xf32> to vector<16x1xf32>
    %cst_37 = arith.constant 3.200000e+01 : f32
    %50 = vector.broadcast %cst_37 : f32 to vector<16x1xf32>
    %51 = arith.divf %49, %50 : vector<16x1xf32>
    %52 = vector.broadcast %51 : vector<16x1xf32> to vector<16x32xf32>
    %53 = arith.subf %47, %52 : vector<16x32xf32>
    %54 = arith.mulf %53, %53 : vector<16x32xf32>
    %cst_38 = arith.constant dense<0.000000e+00> : vector<16xf32>
    %55 = vector.multi_reduction <add>, %54, %cst_38 [1] : vector<16x32xf32> to vector<16xf32>
    %56 = vector.shape_cast %55 : vector<16xf32> to vector<16x1xf32>
    %cst_39 = arith.constant 3.200000e+01 : f32
    %57 = vector.broadcast %cst_39 : f32 to vector<16x1xf32>
    %58 = arith.divf %56, %57 : vector<16x1xf32>
    %59 = vector.broadcast %51 : vector<16x1xf32> to vector<16x32xf32>
    %60 = arith.subf %47, %59 : vector<16x32xf32>
    %cst_40 = arith.constant 9.99999974E-6 : f32
    %61 = vector.broadcast %cst_40 : f32 to vector<16x1xf32>
    %62 = arith.addf %58, %61 : vector<16x1xf32>
    %63 = math.rsqrt %62 : vector<16x1xf32>
    %64 = vector.broadcast %63 : vector<16x1xf32> to vector<16x32xf32>
    %65 = arith.mulf %60, %64 : vector<16x32xf32>
    %c0_41 = arith.constant 0 : index
    %c0_42 = arith.constant 0 : index
    %66 = vector.load %arg10[%c0_41, %c0_42] : memref<1x32xf32, #tpu.memory_space<vmem>>, vector<1x32xf32>
    %67 = vector.broadcast %66 : vector<1x32xf32> to vector<16x32xf32>
    %68 = arith.mulf %65, %67 : vector<16x32xf32>
    %c0_43 = arith.constant 0 : index
    %c0_44 = arith.constant 0 : index
    %69 = vector.load %arg11[%c0_43, %c0_44] : memref<1x32xf32, #tpu.memory_space<vmem>>, vector<1x32xf32>
    %70 = vector.broadcast %69 : vector<1x32xf32> to vector<16x32xf32>
    %71 = arith.addf %68, %70 : vector<16x32xf32>
    %c0_45 = arith.constant 0 : index
    %c0_46 = arith.constant 0 : index
    %72 = vector.load %arg12[%c0_45, %c0_46] : memref<16x32xf32, #tpu.memory_space<vmem>>, vector<16x32xf32>
    tpu.vector_store %arg12[%c0_45, %c0_46], %71 {strides = array<i32>} : memref<16x32xf32, #tpu.memory_space<vmem>>, vector<16x32xf32>,
    return
  }
}

</mosaic_0001>

<llo_original>
// kernel: tpu_custom_call.1
$region0: #{tpu_custom_call.1}
  #allocation0 [shape = 'u32[]', space=smem, size = 0x4, offset = 0x4, fixed_abs, tag = 'smem constant byte address 0x4 - core index']
  #allocation1 [shape = 'u32[72,128]{1,0:T(1,128)}', space=vmem, size = 0x9000, scoped, tag = 'internal scratch']
  %s0 = inlined_call_operand.vmem [shape: f32[16,16], index: 0, kind: input, shape index: {}]
  %s1 = inlined_call_operand.vmem [shape: f32[16,32], index: 1, kind: input, shape index: {}]
  %s2 = inlined_call_operand.vmem [shape: f32[1,32], index: 2, kind: input, shape index: {}]
  %s3 = inlined_call_operand.vmem [shape: f32[32,4], index: 3, kind: input, shape index: {}]
  %s4 = inlined_call_operand.vmem [shape: f32[4,64], index: 4, kind: input, shape index: {}]
  %s5 = inlined_call_operand.vmem [shape: f32[64,32], index: 5, kind: input, shape index: {}]
  %s6 = inlined_call_operand.vmem [shape: f32[1,32], index: 6, kind: input, shape index: {}]
  %s7 = inlined_call_operand.vmem [shape: f32[16,16], index: 7, kind: input, shape index: {}]
  %s8 = inlined_call_operand.vmem [shape: f32[16,32], index: 8, kind: input, shape index: {}]
  %s9 = inlined_call_operand.vmem [shape: f32[1,32], index: 9, kind: input, shape index: {}]
  %s10 = inlined_call_operand.vmem [shape: f32[1,32], index: 10, kind: input, shape index: {}]
  %s11 = inlined_call_operand.vmem [shape: f32[1,32], index: 11, kind: input, shape index: {}]
  %s12 = inlined_call_operand.hbm [shape: f32[16,32], index: 12, kind: output, shape index: {}]
  %s13 = sld [smem:[#allocation0]]
  $region58: #{tpu_custom_call.1} parent=0
    _
  %s15 = ssub.s32 1, %s13
  %s16 = scalar_select 0, %s15, %s13
  $region1: #{tpu_custom_call.1} parent=0
    #allocation2 [shape = 'u8[8192]{0}', space=vmem, size = 0x2000, scoped, tag = 'output window, operand 0, single buffered']
    #allocation3 [shape = 's32[1]{0}', space=sflag, size = 0x4, scoped, tag = 'scoped memory for tpu_custom_call.1']
    %17 = vsyncpa [#allocation3], 0
    // Predicated region
    $region2: #{tpu_custom_call.1} parent=1 // pred_check
      _
    $region3: #{tpu_custom_call.1} parent=1 // pred_check_branch
      %19 = sbr.rel (0) target = $region5
    $region4: #{tpu_custom_call.1} parent=1 // pred_region
      _
    $region5: #{tpu_custom_call.1} parent=1 // pred_fallthru
      _
    // Predicated region
    $region6: #{tpu_custom_call.1} parent=1 // pred_check
      _
    $region7: #{tpu_custom_call.1} parent=1 // pred_check_branch
      %21 = sbr.rel (0) target = $region9
    $region8: #{tpu_custom_call.1} parent=1 // pred_region
      _
    $region9: #{tpu_custom_call.1} parent=1 // pred_fallthru
      _
    // Predicated region
    $region10: #{tpu_custom_call.1} parent=1 // pred_check
      _
    $region11: #{tpu_custom_call.1} parent=1 // pred_check_branch
      %23 = sbr.rel (0) target = $region13
    $region12: #{tpu_custom_call.1} parent=1 // pred_region
      _
    $region13: #{tpu_custom_call.1} parent=1 // pred_fallthru
      _
    // Predicated region
    $region14: #{tpu_custom_call.1} parent=1 // pred_check
      _
    $region15: #{tpu_custom_call.1} parent=1 // pred_check_branch
      %25 = sbr.rel (0) target = $region17
    $region16: #{tpu_custom_call.1} parent=1 // pred_region
      _
    $region17: #{tpu_custom_call.1} parent=1 // pred_fallthru
      _
    // Predicated region
    $region18: #{tpu_custom_call.1} parent=1 // pred_check
      _
    $region19: #{tpu_custom_call.1} parent=1 // pred_check_branch
      %27 = sbr.rel (0) target = $region21
    $region20: #{tpu_custom_call.1} parent=1 // pred_region
      _
    $region21: #{tpu_custom_call.1} parent=1 // pred_fallthru
      _
    // Predicated region
    $region22: #{tpu_custom_call.1} parent=1 // pred_check
      _
    $region23: #{tpu_custom_call.1} parent=1 // pred_check_branch
      %29 = sbr.rel (0) target = $region25
    $region24: #{tpu_custom_call.1} parent=1 // pred_region
      _
    $region25: #{tpu_custom_call.1} parent=1 // pred_fallthru
      _
    // Predicated region
    $region26: #{tpu_custom_call.1} parent=1 // pred_check
      _
    $region27: #{tpu_custom_call.1} parent=1 // pred_check_branch
      %31 = sbr.rel (0) target = $region29
    $region28: #{tpu_custom_call.1} parent=1 // pred_region
      _
    $region29: #{tpu_custom_call.1} parent=1 // pred_fallthru
      _
    // Predicated region
    $region30: #{tpu_custom_call.1} parent=1 // pred_check
      _
    $region31: #{tpu_custom_call.1} parent=1 // pred_check_branch
      %33 = sbr.rel (0) target = $region33
    $region32: #{tpu_custom_call.1} parent=1 // pred_region
      _
    $region33: #{tpu_custom_call.1} parent=1 // pred_fallthru
      _
    // Predicated region
    $region34: #{tpu_custom_call.1} parent=1 // pred_check
      _
    $region35: #{tpu_custom_call.1} parent=1 // pred_check_branch
      %35 = sbr.rel (0) target = $region37
    $region36: #{tpu_custom_call.1} parent=1 // pred_region
      _
    $region37: #{tpu_custom_call.1} parent=1 // pred_fallthru
      _
    // Predicated region
    $region38: #{tpu_custom_call.1} parent=1 // pred_check
      _
    $region39: #{tpu_custom_call.1} parent=1 // pred_check_branch
      %37 = sbr.rel (0) target = $region41
    $region40: #{tpu_custom_call.1} parent=1 // pred_region
      _
    $region41: #{tpu_custom_call.1} parent=1 // pred_fallthru
      _
    // Predicated region
    $region42: #{tpu_custom_call.1} parent=1 // pred_check
      _
    $region43: #{tpu_custom_call.1} parent=1 // pred_check_branch
      %39 = sbr.rel (0) target = $region45
    $region44: #{tpu_custom_call.1} parent=1 // pred_region
      _
    $region45: #{tpu_custom_call.1} parent=1 // pred_fallthru
      _
    // Predicated region
    $region46: #{tpu_custom_call.1} parent=1 // pred_check
      _
    $region47: #{tpu_custom_call.1} parent=1 // pred_check_branch
      %41 = sbr.rel (0) target = $region49
    $region48: #{tpu_custom_call.1} parent=1 // pred_region
      _
    $region49: #{tpu_custom_call.1} parent=1 // pred_fallthru
      _
    %v42 = vld [vmem:[%s0] sm:$0xff]
    %v43 = vld [vmem:[%s0 + $0x8] sm:$0xff]
    %v44 = vld [vmem:[%s7] sm:$0xff]
    %v45 = vld [vmem:[%s7 + $0x8] sm:$0xff]
    %v46 = vld [vmem:[%s1] sm:$0xff]
    %v47 = vld [vmem:[%s1 + $0x8] sm:$0xff]
    %vm48 = vcmask 130048
    %v50 = vsel %vm48, %v42, 0
    %v53 = vsel %vm48, %v43, 0
    %55 = vmatpush.msra.mxu0 0.0
    %56 = vmatpush.msra.mxu0 0.0
    %57 = vmatpush.msra.mxu0 0.0
    %58 = vmatpush.msra.mxu0 0.0
    %59 = vmatpush.msra.mxu0 0.0
    %60 = vmatpush.msra.mxu0 0.0
    %61 = vmatpush.msra.mxu0 0.0
    %62 = vmatpush.msra.mxu0 0.0
    %63 = vmatpush.msra.mxu0 0.0
    %64 = vmatpush.msra.mxu0 0.0
    %65 = vmatpush.msra.mxu0 0.0
    %66 = vmatpush.msra.mxu0 0.0
    %67 = vmatpush.msra.mxu0 0.0
    %68 = vmatpush.msra.mxu0 0.0
    %69 = vmatpush.msra.mxu0 %v47
    %70 = vmatpush.msra.mxu0 %v46
    %71 = vmatmul.f32.gmra.mxu0 %v50
    %v72 = vpop.f32.mrf.mxu0
    %v73 = vadd.f32 0.0, %v72
    %74 = vmatmul.f32.gmra.mxu0 %v53
    %v75 = vpop.f32.mrf.mxu0
    %v76 = vadd.f32 0.0, %v75
    %77 = vdwg.mxu0
    %v78 = vld [vmem:[%s5] sm:$0xff]
    %v79 = vld [vmem:[%s5 + $0x8] sm:$0xff]
    %v80 = vld [vmem:[%s5 + $0x10] sm:$0xff]
    %v81 = vld [vmem:[%s5 + $0x18] sm:$0xff]
    %v82 = vld [vmem:[%s5 + $0x20] sm:$0xff]
    %v83 = vld [vmem:[%s5 + $0x28] sm:$0xff]
    %v84 = vld [vmem:[%s5 + $0x30] sm:$0xff]
    %v85 = vld [vmem:[%s5 + $0x38] sm:$0xff]
    %v86 = vmul.f32 %v73, %v78
    %v87 = vmul.f32 %v76, %v79
    %v88 = vmul.f32 %v73, %v80
    %v89 = vmul.f32 %v76, %v81
    %v90 = vmul.f32 %v73, %v82
    %v91 = vmul.f32 %v76, %v83
    %v92 = vmul.f32 %v73, %v84
    %v93 = vmul.f32 %v76, %v85
    %v94 = vld [vmem:[%s3] sm:$0xff]
    %v95 = vld [vmem:[%s3 + $0x8] sm:$0xff]
    %v96 = vld [vmem:[%s3 + $0x10] sm:$0xff]
    %v97 = vld [vmem:[%s3 + $0x18] sm:$0xff]
    %vm98 = vcmask 261120
    %v100 = vsel %vm98, %v73, 0
    %v103 = vsel %vm98, %v76, 0
    %105 = vmatpush.msra.mxu0 0.0
    %106 = vmatpush.msra.mxu0 0.0
    %107 = vmatpush.msra.mxu0 0.0
    %108 = vmatpush.msra.mxu0 0.0
    %109 = vmatpush.msra.mxu0 0.0
    %110 = vmatpush.msra.mxu0 0.0
    %111 = vmatpush.msra.mxu0 0.0
    %112 = vmatpush.msra.mxu0 0.0
    %113 = vmatpush.msra.mxu0 0.0
    %114 = vmatpush.msra.mxu0 0.0
    %115 = vmatpush.msra.mxu0 0.0
    %116 = vmatpush.msra.mxu0 0.0
    %117 = vmatpush.msra.mxu0 %v97
    %118 = vmatpush.msra.mxu0 %v96
    %119 = vmatpush.msra.mxu0 %v95
    %120 = vmatpush.msra.mxu0 %v94
    %121 = vmatmul.f32.gmra.mxu0 %v100
    %v122 = vpop.f32.mrf.mxu0
    %v123 = vadd.f32 0.0, %v122
    %124 = vmatmul.f32.gmra.mxu0 %v103
    %v125 = vpop.f32.mrf.mxu0
    %v126 = vadd.f32 0.0, %v125
    %127 = vdwg.mxu0
    %v128 = vld [vmem:[%s4] sm:$0xf]
    %v129 = vld [vmem:[%s2] sm:$0x1]
    %v131 = vsel %vm98, %v129, 0
    %v134 = vsel %vm98, %v86, 0
    %v137 = vsel %vm98, %v87, 0
    %v140 = vsel %vm98, %v88, 0
    %v143 = vsel %vm98, %v89, 0
    %v146 = vsel %vm98, %v90, 0
    %v149 = vsel %vm98, %v91, 0
    %v152 = vsel %vm98, %v92, 0
    %v155 = vsel %vm98, %v93, 0
    %157 = vmatpush.xpose.msra.mxu0 0.0
    %158 = vmatpush.xpose.msra.mxu0 0.0
    %159 = vmatpush.xpose.msra.mxu0 0.0
    %160 = vmatpush.xpose.msra.mxu0 0.0
    %161 = vmatpush.xpose.msra.mxu0 0.0
    %162 = vmatpush.xpose.msra.mxu0 0.0
    %163 = vmatpush.xpose.msra.mxu0 0.0
    %164 = vmatpush.xpose.msra.mxu0 0.0
    %165 = vmatpush.xpose.msra.mxu0 %v155
    %166 = vmatpush.xpose.msra.mxu0 %v152
    %167 = vmatpush.xpose.msra.mxu0 %v149
    %168 = vmatpush.xpose.msra.mxu0 %v146
    %169 = vmatpush.xpose.msra.mxu0 %v143
    %170 = vmatpush.xpose.msra.mxu0 %v140
    %171 = vmatpush.xpose.msra.mxu0 %v137
    %172 = vmatpush.xpose.msra.mxu0 %v134
    %173 = vmatmul.f32.gmra.mxu0 %v131
    %v174 = vpop.f32.mrf.mxu0
    %v175 = vadd.f32 0.0, %v174
    %176 = vdwg.mxu0
    %v177 = vperm.slane %v175, 0
    %vm178 = vcmask 31744
    %v180 = vsel %vm178, %v123, 0
    %v183 = vsel %vm178, %v126, 0
    %vm185 = vcmask 1043456
    %v187 = vsel %vm185, %v128, 0
    %189 = vmatpush.msra.mxu0 0.0
    %190 = vmatpush.msra.mxu0 0.0
    %191 = vmatpush.msra.mxu0 0.0
    %192 = vmatpush.msra.mxu0 0.0
    %193 = vmatpush.msra.mxu0 0.0
    %194 = vmatpush.msra.mxu0 0.0
    %195 = vmatpush.msra.mxu0 0.0
    %196 = vmatpush.msra.mxu0 0.0
    %197 = vmatpush.msra.mxu0 0.0
    %198 = vmatpush.msra.mxu0 0.0
    %199 = vmatpush.msra.mxu0 0.0
    %200 = vmatpush.msra.mxu0 0.0
    %201 = vmatpush.msra.mxu0 0.0
    %202 = vmatpush.msra.mxu0 0.0
    %203 = vmatpush.msra.mxu0 0.0
    %204 = vmatpush.msra.mxu0 %v187
    %205 = vmatmul.f32.gmra.mxu0 %v180
    %v206 = vpop.f32.mrf.mxu0
    %v207 = vadd.f32 %v177, %v206
    %208 = vmatmul.f32.gmra.mxu0 %v183
    %v209 = vpop.f32.mrf.mxu0
    %v210 = vadd.f32 %v177, %v209
    %211 = vdwg.mxu0
    %vm212 = vcmp.gt.f32.partialorder %v207, 0.0
    %vm213 = vcmp.gt.f32.partialorder %v210, 0.0
    %v214 = vmul.f32 %v207, 0.2
    %v215 = vmul.f32 %v210, 0.2
    %v216 = vsel %vm212, %v207, %v214
    %v217 = vsel %vm213, %v210, %v215
    %220 = vrot.lane.b32.xlu0 %v44, 16
    %v221 = vpop.permute.xlu0 %220
    %222 = vrot.lane.b32.xlu0 %v45, 16
    %v223 = vpop.permute.xlu0 %222
    %226 = vrot.lane.b32.xlu0 %v44, 32
    %v227 = vpop.permute.xlu0 %226
    %228 = vrot.lane.b32.xlu0 %v45, 32
    %v229 = vpop.permute.xlu0 %228
    %232 = vrot.lane.b32.xlu0 %v44, 48
    %v233 = vpop.permute.xlu0 %232
    %234 = vrot.lane.b32.xlu0 %v45, 48
    %v235 = vpop.permute.xlu0 %234
    %v238 = vsel %vm48, %v44, %v221
    %v239 = vsel %vm48, %v45, %v223
    %v240 = vsel %vm98, %v238, %v227
    %v241 = vsel %vm98, %v239, %v229
    %vm242 = vcmask 392192
    %v243 = vsel %vm242, %v240, %v233
    %v244 = vsel %vm242, %v241, %v235
    %vm245 = vcmp.gt.f32.partialorder %v243, 0.0
    %vm246 = vcmp.gt.f32.partialorder %v244, 0.0
    %v247 = vsel %vm245, %v216, -1e+30
    %v248 = vsel %vm246, %v217, -1e+30
    %vm249 = vcmask 523264
    %v250 = vsel %vm249, %v247, -inf
    %251 = vmax.xlane.f32.xlu0 %v250
    %v252 = vpop.xlane.xlu0 %251
    %v253 = vsel %vm249, %v248, -inf
    %254 = vmax.xlane.f32.xlu0 %v253
    %v255 = vpop.xlane.xlu0 %254
    %v256 = vsub.f32 %v247, %v252
    %v257 = vsub.f32 %v248, %v255
    %v258 = vmul.f32 %v256, 1.442695
    %v259 = vpow.pop %v258
    %v260 = vmul.f32 %v257, 1.442695
    %v261 = vpow.pop %v260
    %v262 = vsel %vm245, %v259, 0.0
    %v263 = vsel %vm246, %v261, 0.0
    %v265 = vsel %vm249, %v262, 0
    %v268 = vsel %vm249, %v263, 0
    %v270 = vsel %vm249, %v128, 0
    %272 = vmatpush.xpose.msra.mxu0 0.0
    %273 = vmatpush.xpose.msra.mxu0 0.0
    %274 = vmatpush.xpose.msra.mxu0 0.0
    %275 = vmatpush.xpose.msra.mxu0 0.0
    %276 = vmatpush.xpose.msra.mxu0 0.0
    %277 = vmatpush.xpose.msra.mxu0 0.0
    %278 = vmatpush.xpose.msra.mxu0 0.0
    %279 = vmatpush.xpose.msra.mxu0 0.0
    %280 = vmatpush.xpose.msra.mxu0 0.0
    %281 = vmatpush.xpose.msra.mxu0 0.0
    %282 = vmatpush.xpose.msra.mxu0 0.0
    %283 = vmatpush.xpose.msra.mxu0 0.0
    %284 = vmatpush.xpose.msra.mxu0 0.0
    %285 = vmatpush.xpose.msra.mxu0 0.0
    %286 = vmatpush.xpose.msra.mxu0 0.0
    %287 = vmatpush.xpose.msra.mxu0 %v270
    %288 = vmatmul.f32.gmra.mxu0 %v265
    %v289 = vpop.f32.mrf.mxu0
    %v290 = vadd.f32 0.0, %v289
    %291 = vmatmul.f32.gmra.mxu0 %v268
    %v292 = vpop.f32.mrf.mxu0
    %v293 = vadd.f32 0.0, %v292
    %294 = vdwg.mxu0
    %v295 = vrcp.pop %v290
    %v296 = vmul.f32 %v290, %v295
    %v297 = vsub.f32 1.0, %v296
    %v298 = vmul.f32 %v295, %v297
    %v299 = vadd.f32 %v295, %v298
    %vm300 = vweird.f32 %v290
    %vm301 = vweird.f32 %v295
    %vm302 = vmor %vm300, %vm301
    %v303 = vsel %vm302, %v295, %v299
    %v304 = vand.u32 2147483647, %v290
    %vm305 = vcmp.eq.f32.partialorder %v304, 8.507059e+37
    %v306 = vand.u32 %v290, 2147483648
    %v307 = vor.u32 1.1754944e-38, %v306
    %v308 = vsel %vm305, %v307, %v303
    %v309 = vrcp.pop %v293
    %v310 = vmul.f32 %v293, %v309
    %v311 = vsub.f32 1.0, %v310
    %v312 = vmul.f32 %v309, %v311
    %v313 = vadd.f32 %v309, %v312
    %vm314 = vweird.f32 %v293
    %vm315 = vweird.f32 %v309
    %vm316 = vmor %vm314, %vm315
    %v317 = vsel %vm316, %v309, %v313
    %v318 = vand.u32 2147483647, %v293
    %vm319 = vcmp.eq.f32.partialorder %v318, 8.507059e+37
    %v320 = vand.u32 %v293, 2147483648
    %v321 = vor.u32 1.1754944e-38, %v320
    %v322 = vsel %vm319, %v321, %v317
    %v324 = vsel %vm178, %v308, 0
    %v327 = vsel %vm178, %v322, 0
    %329 = vmatpush.msra.mxu0 0.0
    %330 = vmatpush.msra.mxu0 0.0
    %331 = vmatpush.msra.mxu0 0.0
    %332 = vmatpush.msra.mxu0 0.0
    %333 = vmatpush.msra.mxu0 0.0
    %334 = vmatpush.msra.mxu0 0.0
    %335 = vmatpush.msra.mxu0 0.0
    %336 = vmatpush.msra.mxu0 0.0
    %337 = vmatpush.msra.mxu0 0.0
    %338 = vmatpush.msra.mxu0 0.0
    %339 = vmatpush.msra.mxu0 0.0
    %340 = vmatpush.msra.mxu0 0.0
    %341 = vmatpush.msra.mxu0 0.0
    %342 = vmatpush.msra.mxu0 0.0
    %343 = vmatpush.msra.mxu0 0.0
    %344 = vmatpush.msra.mxu0 %v187
    %345 = vmatmul.f32.gmra.mxu0 %v324
    %v346 = vpop.f32.mrf.mxu0
    %v347 = vadd.f32 0.0, %v346
    %348 = vmatmul.f32.gmra.mxu0 %v327
    %v349 = vpop.f32.mrf.mxu0
    %v350 = vadd.f32 0.0, %v349
    %351 = vdwg.mxu0
    %v352 = vmul.f32 %v262, %v347
    %v353 = vmul.f32 %v263, %v350
    %v354 = vld [vmem:[%s6] sm:$0x1]
    %v356 = vperm.slane %v354, 0
    %v359 = vsel %vm249, %v352, 0
    %v362 = vsel %vm249, %v353, 0
    %364 = vmatpush.msra.mxu0 0.0
    %365 = vmatpush.msra.mxu0 0.0
    %366 = vmatpush.msra.mxu0 0.0
    %367 = vmatpush.msra.mxu0 0.0
    %368 = vmatpush.msra.mxu0 0.0
    %369 = vmatpush.msra.mxu0 0.0
    %370 = vmatpush.msra.mxu0 0.0
    %371 = vmatpush.msra.mxu0 0.0
    %372 = vmatpush.msra.mxu0 %v93
    %373 = vmatpush.msra.mxu0 %v92
    %374 = vmatpush.msra.mxu0 %v91
    %375 = vmatpush.msra.mxu0 %v90
    %376 = vmatpush.msra.mxu0 %v89
    %377 = vmatpush.msra.mxu0 %v88
    %378 = vmatpush.msra.mxu0 %v87
    %379 = vmatpush.msra.mxu0 %v86
    %380 = vmatmul.f32.gmra.mxu0 %v359
    %v381 = vpop.f32.mrf.mxu0
    %v382 = vadd.f32 %v356, %v381
    %383 = vmatmul.f32.gmra.mxu0 %v362
    %v384 = vpop.f32.mrf.mxu0
    %v385 = vadd.f32 %v356, %v384
    %386 = vdwg.mxu0
    %v387 = vld [vmem:[%s8] sm:$0xff]
    %v388 = vld [vmem:[%s8 + $0x8] sm:$0xff]
    %v389 = vld [vmem:[%s9] sm:$0x1]
    %v391 = vperm.slane %v389, 0
    %393 = vmatpush.msra.mxu0 0.0
    %394 = vmatpush.msra.mxu0 0.0
    %395 = vmatpush.msra.mxu0 0.0
    %396 = vmatpush.msra.mxu0 0.0
    %397 = vmatpush.msra.mxu0 0.0
    %398 = vmatpush.msra.mxu0 0.0
    %399 = vmatpush.msra.mxu0 0.0
    %400 = vmatpush.msra.mxu0 0.0
    %401 = vmatpush.msra.mxu0 0.0
    %402 = vmatpush.msra.mxu0 0.0
    %403 = vmatpush.msra.mxu0 0.0
    %404 = vmatpush.msra.mxu0 0.0
    %405 = vmatpush.msra.mxu0 0.0
    %406 = vmatpush.msra.mxu0 0.0
    %407 = vmatpush.msra.mxu0 %v388
    %408 = vmatpush.msra.mxu0 %v387
    %409 = vmatmul.f32.gmra.mxu0 %v50
    %v410 = vpop.f32.mrf.mxu0
    %v411 = vadd.f32 %v391, %v410
    %412 = vmatmul.f32.gmra.mxu0 %v53
    %v413 = vpop.f32.mrf.mxu0
    %v414 = vadd.f32 %v391, %v413
    %415 = vdwg.mxu0
    %v416 = vadd.f32 %v382, %v411
    %v417 = vadd.f32 %v385, %v414
    %v418 = vsel %vm98, %v416, 0.0
    %419 = vadd.xlane.f32.xlu0 %v418
    %v420 = vpop.xlane.xlu0 %419
    %v421 = vsel %vm98, %v417, 0.0
    %422 = vadd.xlane.f32.xlu0 %v421
    %v423 = vpop.xlane.xlu0 %422
    %v424 = vrcp.pop 32.0
    %v425 = vmul.f32 32.0, %v424
    %v426 = vsub.f32 1.0, %v425
    %v427 = vmul.f32 %v424, %v426
    %v428 = vadd.f32 %v424, %v427
    %vm429 = vweird.f32 %v424
    %v430 = vsel %vm429, %v424, %v428
    %v431 = vmul.f32 %v420, %v430
    %v432 = vmul.f32 %v423, %v430
    %v433 = vsub.f32 %v416, %v431
    %v434 = vsub.f32 %v417, %v432
    %v435 = vmul.f32 %v433, %v433
    %v436 = vmul.f32 %v434, %v434
    %v437 = vsel %vm98, %v435, 0.0
    %438 = vadd.xlane.f32.xlu0 %v437
    %v439 = vpop.xlane.xlu0 %438
    %v440 = vsel %vm98, %v436, 0.0
    %441 = vadd.xlane.f32.xlu0 %v440
    %v442 = vpop.xlane.xlu0 %441
    %v443 = vmul.f32 %v439, %v430
    %v444 = vmul.f32 %v442, %v430
    %v445 = vadd.f32 %v443, 1e-05
    %v446 = vadd.f32 %v444, 1e-05
    %v447 = vrsqrt.pop %v445
    %v448 = vmul.f32 %v447, %v445
    %v449 = vmul.f32 %v448, %v447
    %v450 = vmul.f32 0.5, %v449
    %v451 = vsub.f32 1.5, %v450
    %v452 = vmul.f32 %v447, %v451
    %vm453 = vweird.f32 %v445
    %vm454 = vweird.f32 %v447
    %vm455 = vmor %vm453, %vm454
    %v456 = vsel %vm455, %v447, %v452
    %v457 = vrsqrt.pop %v446
    %v458 = vmul.f32 %v457, %v446
    %v459 = vmul.f32 %v458, %v457
    %v460 = vmul.f32 0.5, %v459
    %v461 = vsub.f32 1.5, %v460
    %v462 = vmul.f32 %v457, %v461
    %vm463 = vweird.f32 %v446
    %vm464 = vweird.f32 %v457
    %vm465 = vmor %vm463, %vm464
    %v466 = vsel %vm465, %v457, %v462
    %v467 = vmul.f32 %v433, %v456
    %v468 = vmul.f32 %v434, %v466
    %v469 = vld [vmem:[%s10] sm:$0x1]
    %v471 = vperm.slane %v469, 0
    %v473 = vmul.f32 %v467, %v471
    %v474 = vmul.f32 %v468, %v471
    %v475 = vld [vmem:[%s11] sm:$0x1]
    %v477 = vperm.slane %v475, 0
    %v479 = vadd.f32 %v473, %v477
    %v480 = vadd.f32 %v474, %v477
    %481 = vst.msk [vmem:[#allocation2] sm:$0xff] %vm98, %v479
    %482 = vst.msk [vmem:[#allocation2 + $0x8] sm:$0xff] %vm98, %v480
    // Predicated region
    $region50: #{tpu_custom_call.1} parent=1 // pred_check
      _
    $region51: #{tpu_custom_call.1} parent=1 // pred_check_branch
      %484 = sbr.rel (0) target = $region53
    $region52: #{tpu_custom_call.1} parent=1 // pred_region
      %486 = vsyncadd [#allocation3], 0
      %s487 = sshll.u32 [#allocation2], 4
      %s488 = int_to_ptr.vmem [resolvable:$true] %s487
      %s489 = sshll.u32 %s12, 4
      %s490 = int_to_ptr.hbm [resolvable:$true] %s489
      %495 = dma.vmem_to_hbm [thread:$0]  %s488, 256, %s490, [#allocation3], 128, 128, 8
    $region53: #{tpu_custom_call.1} parent=1 // pred_fallthru
      _
    // Predicated region
    $region54: #{tpu_custom_call.1} parent=1 // pred_check
      _
    $region55: #{tpu_custom_call.1} parent=1 // pred_check_branch
      %497 = sbr.rel (0) target = $region57
    $region56: #{tpu_custom_call.1} parent=1 // pred_region
      %499 = dma.done [#allocation3], 256
    $region57: #{tpu_custom_call.1} parent=1 // pred_fallthru
      _
    %500 = vsyncpa [#allocation3], 1

</llo_original>
